<compile_context>
chip_gen: v7x
topology: tpu7x:2x2x1
jax: 0.10.0
libtpu: 0.0.40
codegen_flags: <defaults>
</compile_context>

<pallas_src>
import jax
import jax.numpy as jnp
from jax.experimental import pallas as pl
from jax.experimental.pallas import tpu as pltpu


def _round_up(x: int, m: int) -> int:
    return ((x + m - 1) // m) * m


def _qcritic_kernel(obs_ref, act_ref, w1_ref, b1_ref, w2_ref, b2_ref,
                    wo_ref, bo_ref, out_ref):
    cd = w1_ref.dtype  # bf16 compute dtype (MXU operands)

    # Fused concat + in-kernel bf16 cast; one small transpose of the (tile, 20)
    # bf16 block so the whole MLP runs feature-major (lane dim = batch tile).
    x = jnp.concatenate([obs_ref[...].astype(cd), act_ref[...].astype(cd)],
                        axis=1)                       # (tile, d_in) bf16

    # ---- layer 1: (H1, d_in) @ (d_in, tile) -> (H1, tile), f32 accumulate ----
    h1 = jnp.dot(w1_ref[...], x.T, preferred_element_type=jnp.float32)
    h1 = jnp.maximum(h1 + b1_ref[...], 0.0)           # f32 VPU (v5e-safe)

    # ---- layer 2: (H2, H1) @ (H1, tile) -> (H2, tile) ----
    h2 = jnp.dot(w2_ref[...], h1.astype(cd), preferred_element_type=jnp.float32)
    h2 = jnp.maximum(h2 + b2_ref[...], 0.0)

    # ---- output layer (out_features=1): f32 VPU multiply + sublane reduce ----
    # q[b] = sum_h wo[h] * h2[h, b]  -> lane-dense (1, tile) row.
    q = jnp.sum(h2 * wo_ref[...], axis=0, keepdims=True)
    out_ref[...] = (q + bo_ref[...])[None].astype(out_ref.dtype)   # (1, 1, tile)


def qcritic_forward(obs, action, params, *, tile_b: int = 2048,
                    compute_dtype=jnp.bfloat16):
    """SAC Q-critic forward: Q(obs, action) -> (B, 1) float32.

    params = (w1, b1, w2, b2, wo, bo) in torch nn.Linear layout:
      w1 (H1, dim_obs+dim_action), b1 (H1,), w2 (H2, H1), b2 (H2,),
      wo (1, H2), bo (1,).
    """
    w1, b1, w2, b2, wo, bo = params
    B, dim_obs = obs.shape
    dim_act = action.shape[1]
    H1, d_in = w1.shape
    H2 = w2.shape[0]
    assert d_in == dim_obs + dim_act

    # --- batch tiling: few big steps, minimal padding, >=2 steps for v7x ---
    n_tiles = max(1, pl.cdiv(B, tile_b))
    if B >= 512:
        n_tiles = max(n_tiles, 2)          # shard across v7x's two TensorCores
    tile = _round_up(pl.cdiv(B, n_tiles), 8)
    Bp = n_tiles * tile
    if Bp != B:
        pad = ((0, Bp - B), (0, 0))
        obs = jnp.pad(obs, pad)
        action = jnp.pad(action, pad)

    # Activations stay f32 (cast to bf16 inside the kernel); weights are cast
    # once here (they are tiny and VMEM-resident across grid steps).
    f32 = jnp.float32
    obs_in = obs.astype(f32)
    act_in = action.astype(f32)
    w1_c = w1.astype(compute_dtype)                    # (H1, d_in)
    w2_c = w2.astype(compute_dtype)                    # (H2, H1)
    b1_c = b1.reshape(H1, 1).astype(f32)
    b2_c = b2.reshape(H2, 1).astype(f32)
    wo_c = wo.reshape(H2, 1).astype(f32)               # output weights as column
    bo_c = bo.reshape(1, 1).astype(f32)

    def resident(a):   # same block every step -> stays VMEM-resident
        return pl.BlockSpec(a.shape, lambda i: (0,) * a.ndim)

    cost = pl.CostEstimate(
        flops=2 * Bp * (d_in * H1 + H1 * H2 + H2),
        transcendentals=0,
        bytes_accessed=(Bp * d_in * 4 + Bp * 4
                        + (w1_c.size + w2_c.size) * 2
                        + (b1_c.size + b2_c.size + wo_c.size + bo_c.size) * 4))

    # Per-step VMEM (double-buffered activations; f32 inputs lane-padded to 128
    # lanes in VMEM) + feature-major intermediates; generous headroom.
    vmem_est = (2 * 2 * tile * 128 * 4            # obs + act blocks, x2 buffers
                + 2 * tile * 4                    # (1, 1, tile) output, x2 buffers
                + 4 * max(H1, H2) * tile * 4      # x^T / h1 / h2 upper bound
                + (1 << 20))                      # weights, biases, slack
    vmem_limit = int(min(max(32 << 20, 2 * vmem_est), 56 << 20))

    out = pl.pallas_call(
        _qcritic_kernel,
        out_shape=jax.ShapeDtypeStruct((n_tiles, 1, tile), jnp.float32),
        grid=(n_tiles,),
        in_specs=[
            pl.BlockSpec((tile, dim_obs), lambda i: (i, 0)),
            pl.BlockSpec((tile, dim_act), lambda i: (i, 0)),
            resident(w1_c), resident(b1_c),
            resident(w2_c), resident(b2_c),
            resident(wo_c), resident(bo_c),
        ],
        out_specs=pl.BlockSpec((1, 1, tile), lambda i: (i, 0, 0)),
        compiler_params=pltpu.CompilerParams(
            dimension_semantics=("parallel",),
            vmem_limit_bytes=vmem_limit),
        cost_estimate=cost,
    )(obs_in, act_in, w1_c, b1_c, w2_c, b2_c, wo_c, bo_c)

    return out.reshape(Bp, 1)[:B]


def qcritic_reference(obs, action, params, compute_dtype=jnp.float32):
    """Pure-JAX reference of the same math (== PyTorch forward when f32)."""
    w1, b1, w2, b2, wo, bo = params
    x = jnp.concatenate([obs, action], axis=1).astype(compute_dtype)
    h1 = jnp.dot(x, w1.T.astype(compute_dtype), preferred_element_type=jnp.float32)
    h1 = jnp.maximum(h1 + b1[None, :], 0.0)
    h2 = jnp.dot(h1.astype(compute_dtype), w2.T.astype(compute_dtype),
                 preferred_element_type=jnp.float32)
    h2 = jnp.maximum(h2 + b2[None, :], 0.0)
    return h2 @ wo.T + bo[None, :]


def _xavier_uniform(key, shape, fan_in, fan_out):
    # torch.nn.init.xavier_uniform_: U(-a, a), a = sqrt(6 / (fan_in + fan_out))
    bound = (6.0 / (fan_in + fan_out)) ** 0.5
    return jax.random.uniform(key, shape, jnp.float32, -bound, bound)


def init_qcritic_params(key, dim_obs, dim_action, dims_hidden=(64, 64)):
    # Kernel is specialized to the module's default two hidden layers.
    assert len(dims_hidden) == 2, "kernel implements the default (64, 64) topology"
    h1, h2 = dims_hidden
    d_in = dim_obs + dim_action
    k1, k2, k3 = jax.random.split(key, 3)
    # torch nn.Linear weight layout: (out_features, in_features)
    w1 = _xavier_uniform(k1, (h1, d_in), d_in, h1)
    w2 = _xavier_uniform(k2, (h2, h1), h1, h2)
    wo = _xavier_uniform(k3, (1, h2), h2, 1)
    return (w1, jnp.zeros((h1,), jnp.float32),
            w2, jnp.zeros((h2,), jnp.float32),
            wo, jnp.zeros((1,), jnp.float32))


if __name__ == "__main__":
    dim_obs, dim_action, batch = 16, 4, 8

    key = jax.random.PRNGKey(0)
    k_params, k_obs, k_act = jax.random.split(key, 3)

    params = init_qcritic_params(k_params, dim_obs, dim_action, dims_hidden=(64, 64))
    obs = jax.random.normal(k_obs, (batch, dim_obs), jnp.float32)
    action = jax.random.normal(k_act, (batch, dim_action), jnp.float32)

    q = qcritic_forward(obs, action, params)
    jax.block_until_ready(q)
    assert q.shape == (batch, 1)

    # Tight check vs a reference using the same bf16-rounded operands.
    ref_bf16 = qcritic_reference(obs, action, params, jnp.bfloat16)
    assert jnp.allclose(q, ref_bf16, atol=2e-2, rtol=2e-2), "mismatch vs bf16 reference"

    # Sanity check vs the full-f32 (PyTorch-equivalent) math; loose tolerance
    # because the hidden layers feed bf16 operands to the MXU.
    ref_f32 = qcritic_reference(obs, action, params, jnp.float32)
    assert jnp.allclose(q, ref_f32, atol=1e-1, rtol=1e-1), "mismatch vs f32 reference"

    print("KERNEL_OK")
</pallas_src>

<mosaic_0001>
module attributes {stable_mosaic.version = 11 : i64} {
  func.func @_qcritic_kernel(%arg0: i32, %arg1: memref<8x16xf32, #tpu.memory_space<vmem>>, %arg2: memref<8x4xf32, #tpu.memory_space<vmem>>, %arg3: memref<64x20xbf16, #tpu.memory_space<vmem>>, %arg4: memref<64x1xf32, #tpu.memory_space<vmem>>, %arg5: memref<64x64xbf16, #tpu.memory_space<vmem>>, %arg6: memref<64x1xf32, #tpu.memory_space<vmem>>, %arg7: memref<64x1xf32, #tpu.memory_space<vmem>>, %arg8: memref<1x1xf32, #tpu.memory_space<vmem>>, %arg9: memref<1x1x8xf32, #tpu.memory_space<vmem>>) attributes {dimension_semantics = [#tpu.dimension_semantics<parallel>], iteration_bounds = array<i64: 1>, scalar_prefetch = 0 : i64, scratch_operands = 0 : i64, tpu.core_type = #tpu.core_type<tc>, window_params = [{transform_indices = @transform_0, window_bounds = array<i64: 8, 16>}, {transform_indices = @transform_1, window_bounds = array<i64: 8, 4>}, {pipeline_mode = #tpu.pipeline_mode<synchronous>, transform_indices = @transform_2, window_bounds = array<i64: 64, 20>}, {pipeline_mode = #tpu.pipeline_mode<synchronous>, transform_indices = @transform_3, window_bounds = array<i64: 64, 1>}, {pipeline_mode = #tpu.pipeline_mode<synchronous>, transform_indices = @transform_4, window_bounds = array<i64: 64, 64>}, {pipeline_mode = #tpu.pipeline_mode<synchronous>, transform_indices = @transform_5, window_bounds = array<i64: 64, 1>}, {pipeline_mode = #tpu.pipeline_mode<synchronous>, transform_indices = @transform_6, window_bounds = array<i64: 64, 1>}, {pipeline_mode = #tpu.pipeline_mode<synchronous>, transform_indices = @transform_7, window_bounds = array<i64: 1, 1>}, {transform_indices = @transform_8, window_bounds = array<i64: 1, 1, 8>}]} {
    %c0 = arith.constant 0 : index
    %c0_0 = arith.constant 0 : index
    %0 = vector.load %arg1[%c0, %c0_0] : memref<8x16xf32, #tpu.memory_space<vmem>>, vector<8x16xf32>
    %1 = arith.truncf %0 : vector<8x16xf32> to vector<8x16xbf16>
    %c0_1 = arith.constant 0 : index
    %c0_2 = arith.constant 0 : index
    %2 = vector.load %arg2[%c0_1, %c0_2] : memref<8x4xf32, #tpu.memory_space<vmem>>, vector<8x4xf32>
    %3 = arith.truncf %2 : vector<8x4xf32> to vector<8x4xbf16>
    %4 = tpu.concatenate %1, %3 in 1 : vector<8x16xbf16>, vector<8x4xbf16> -> vector<8x20xbf16>
    %c0_3 = arith.constant 0 : index
    %c0_4 = arith.constant 0 : index
    %5 = vector.load %arg3[%c0_3, %c0_4] : memref<64x20xbf16, #tpu.memory_space<vmem>>, vector<64x20xbf16>
    %6 = tpu.transpose %4, [1, 0] : vector<8x20xbf16> -> vector<20x8xbf16>
    %cst = arith.constant dense<0.000000e+00> : vector<64x8xf32>
    %7 = tpu.matmul %5, %6, %cst {dimension_numbers = #tpu.dot_dimension_numbers<[1], [0], [0], [1], [0, 0, 1, 1], [], []>} : vector<64x20xbf16>, vector<20x8xbf16>, vector<64x8xf32> -> vector<64x8xf32>
    %c0_5 = arith.constant 0 : index
    %c0_6 = arith.constant 0 : index
    %8 = vector.load %arg4[%c0_5, %c0_6] : memref<64x1xf32, #tpu.memory_space<vmem>>, vector<64x1xf32>
    %9 = vector.broadcast %8 : vector<64x1xf32> to vector<64x8xf32>
    %10 = arith.addf %7, %9 : vector<64x8xf32>
    %cst_7 = arith.constant 0.000000e+00 : f32
    %11 = vector.broadcast %cst_7 : f32 to vector<64x8xf32>
    %12 = arith.maximumf %10, %11 : vector<64x8xf32>
    %c0_8 = arith.constant 0 : index
    %c0_9 = arith.constant 0 : index
    %13 = vector.load %arg5[%c0_8, %c0_9] : memref<64x64xbf16, #tpu.memory_space<vmem>>, vector<64x64xbf16>
    %14 = arith.truncf %12 : vector<64x8xf32> to vector<64x8xbf16>
    %cst_10 = arith.constant dense<0.000000e+00> : vector<64x8xf32>
    %15 = tpu.matmul %13, %14, %cst_10 {dimension_numbers = #tpu.dot_dimension_numbers<[1], [0], [0], [1], [0, 0, 1, 1], [], []>} : vector<64x64xbf16>, vector<64x8xbf16>, vector<64x8xf32> -> vector<64x8xf32>
    %c0_11 = arith.constant 0 : index
    %c0_12 = arith.constant 0 : index
    %16 = vector.load %arg6[%c0_11, %c0_12] : memref<64x1xf32, #tpu.memory_space<vmem>>, vector<64x1xf32>
    %17 = vector.broadcast %16 : vector<64x1xf32> to vector<64x8xf32>
    %18 = arith.addf %15, %17 : vector<64x8xf32>
    %cst_13 = arith.constant 0.000000e+00 : f32
    %19 = vector.broadcast %cst_13 : f32 to vector<64x8xf32>
    %20 = arith.maximumf %18, %19 : vector<64x8xf32>
    %c0_14 = arith.constant 0 : index
    %c0_15 = arith.constant 0 : index
    %21 = vector.load %arg7[%c0_14, %c0_15] : memref<64x1xf32, #tpu.memory_space<vmem>>, vector<64x1xf32>
    %22 = vector.broadcast %21 : vector<64x1xf32> to vector<64x8xf32>
    %23 = arith.mulf %20, %22 : vector<64x8xf32>
    %cst_16 = arith.constant dense<0.000000e+00> : vector<8xf32>
    %24 = vector.multi_reduction <add>, %23, %cst_16 [0] : vector<64x8xf32> to vector<8xf32>
    %25 = vector.shape_cast %24 : vector<8xf32> to vector<1x8xf32>
    %c0_17 = arith.constant 0 : index
    %c0_18 = arith.constant 0 : index
    %26 = vector.load %arg8[%c0_17, %c0_18] : memref<1x1xf32, #tpu.memory_space<vmem>>, vector<1x1xf32>
    %27 = vector.broadcast %26 : vector<1x1xf32> to vector<1x8xf32>
    %28 = arith.addf %25, %27 : vector<1x8xf32>
    %29 = vector.shape_cast %28 : vector<1x8xf32> to vector<1x1x8xf32>
    %c0_19 = arith.constant 0 : index
    %c0_20 = arith.constant 0 : index
    %c0_21 = arith.constant 0 : index
    %30 = vector.load %arg9[%c0_19, %c0_20, %c0_21] : memref<1x1x8xf32, #tpu.memory_space<vmem>>, vector<1x1x8xf32>
    tpu.vector_store %arg9[%c0_19, %c0_20, %c0_21], %29 {strides = array<i32>} : memref<1x1x8xf32, #tpu.memory_space<vmem>>, vector<1x1x8xf32>,
    return
  }
  func.func @transform_0(%arg0: i32) -> (i32, i32) {
    %c0_i32 = arith.constant 0 : i32
    %c0_i32_0 = arith.constant 0 : i32
    return %arg0, %c0_i32 : i32, i32
  }
  func.func @transform_1(%arg0: i32) -> (i32, i32) {
    %c0_i32 = arith.constant 0 : i32
    %c0_i32_0 = arith.constant 0 : i32
    return %arg0, %c0_i32 : i32, i32
  }
  func.func @transform_2(%arg0: i32) -> (i32, i32) {
    %c0_i32 = arith.constant 0 : i32
    %c0_i32_0 = arith.constant 0 : i32
    %c0_i32_1 = arith.constant 0 : i32
    return %c0_i32, %c0_i32_0 : i32, i32
  }
  func.func @transform_3(%arg0: i32) -> (i32, i32) {
    %c0_i32 = arith.constant 0 : i32
    %c0_i32_0 = arith.constant 0 : i32
    %c0_i32_1 = arith.constant 0 : i32
    return %c0_i32, %c0_i32_0 : i32, i32
  }
  func.func @transform_4(%arg0: i32) -> (i32, i32) {
    %c0_i32 = arith.constant 0 : i32
    %c0_i32_0 = arith.constant 0 : i32
    %c0_i32_1 = arith.constant 0 : i32
    return %c0_i32, %c0_i32_0 : i32, i32
  }
  func.func @transform_5(%arg0: i32) -> (i32, i32) {
    %c0_i32 = arith.constant 0 : i32
    %c0_i32_0 = arith.constant 0 : i32
    %c0_i32_1 = arith.constant 0 : i32
    return %c0_i32, %c0_i32_0 : i32, i32
  }
  func.func @transform_6(%arg0: i32) -> (i32, i32) {
    %c0_i32 = arith.constant 0 : i32
    %c0_i32_0 = arith.constant 0 : i32
    %c0_i32_1 = arith.constant 0 : i32
    return %c0_i32, %c0_i32_0 : i32, i32
  }
  func.func @transform_7(%arg0: i32) -> (i32, i32) {
    %c0_i32 = arith.constant 0 : i32
    %c0_i32_0 = arith.constant 0 : i32
    %c0_i32_1 = arith.constant 0 : i32
    return %c0_i32, %c0_i32_0 : i32, i32
  }
  func.func @transform_8(%arg0: i32) -> (i32, i32, i32) {
    %c0_i32 = arith.constant 0 : i32
    %c0_i32_0 = arith.constant 0 : i32
    %c0_i32_1 = arith.constant 0 : i32
    return %arg0, %c0_i32, %c0_i32_0 : i32, i32, i32
  }
}

</mosaic_0001>

<llo_original>
// kernel: tpu_custom_call.1
$region0: #{tpu_custom_call.1}
  #allocation0 [shape = 'u32[]', space=smem, size = 0x4, offset = 0x4, fixed_abs, tag = 'smem constant byte address 0x4 - core index']
  #allocation1 [shape = 'u32[144,128]{1,0:T(1,128)}', space=vmem, size = 0x12000, scoped, tag = 'internal scratch']
  #allocation2 [shape = 'f32[1,1]{1,0:T(1,128)S(1)}', space=vmem, size = 0x200, scoped, tag = 'scoped memory for tpu_custom_call.1']
  %s0 = inlined_call_operand.vmem [shape: f32[8,16], index: 0, kind: input, shape index: {}]
  %s1 = inlined_call_operand.vmem [shape: f32[8,4], index: 1, kind: input, shape index: {}]
  %s2 = inlined_call_operand.vmem [shape: bf16[64,20], index: 2, kind: input, shape index: {}]
  %s3 = inlined_call_operand.vmem [shape: f32[64,1], index: 3, kind: input, shape index: {}]
  %s4 = inlined_call_operand.vmem [shape: bf16[64,64], index: 4, kind: input, shape index: {}]
  %s5 = inlined_call_operand.vmem [shape: f32[64,1], index: 5, kind: input, shape index: {}]
  %s6 = inlined_call_operand.vmem [shape: f32[64,1], index: 6, kind: input, shape index: {}]
  %s7 = inlined_call_operand.<no memory space> [shape: f32[1,1], index: 7, kind: input, shape index: {}]
  %s8 = inlined_call_operand.hbm [shape: f32[1,1,8], index: 8, kind: output, shape index: {}]
  %s9 = sld [smem:[#allocation0]]
  $region42: #{tpu_custom_call.1} parent=0
    _
  %s11 = ssub.s32 1, %s9
  %s12 = scalar_select 0, %s11, %s9
  %v13 = vstv %s7
  %14 = vst [vmem:[#allocation2] sm:$0x1] %v13
  $region1: #{tpu_custom_call.1} parent=0
    #allocation3 [shape = 'u8[512]{0}', space=vmem, size = 0x400, scoped, tag = 'output window, operand 0, single buffered']
    #allocation4 [shape = 's32[1]{0}', space=sflag, size = 0x4, scoped, tag = 'scoped memory for tpu_custom_call.1']
    %15 = vsyncpa [#allocation4], 0
    // Predicated region
    $region2: #{tpu_custom_call.1} parent=1 // pred_check
      _
    $region3: #{tpu_custom_call.1} parent=1 // pred_check_branch
      %17 = sbr.rel (0) target = $region5
    $region4: #{tpu_custom_call.1} parent=1 // pred_region
      _
    $region5: #{tpu_custom_call.1} parent=1 // pred_fallthru
      _
    // Predicated region
    $region6: #{tpu_custom_call.1} parent=1 // pred_check
      _
    $region7: #{tpu_custom_call.1} parent=1 // pred_check_branch
      %19 = sbr.rel (0) target = $region9
    $region8: #{tpu_custom_call.1} parent=1 // pred_region
      _
    $region9: #{tpu_custom_call.1} parent=1 // pred_fallthru
      _
    // Predicated region
    $region10: #{tpu_custom_call.1} parent=1 // pred_check
      _
    $region11: #{tpu_custom_call.1} parent=1 // pred_check_branch
      %21 = sbr.rel (0) target = $region13
    $region12: #{tpu_custom_call.1} parent=1 // pred_region
      _
    $region13: #{tpu_custom_call.1} parent=1 // pred_fallthru
      _
    // Predicated region
    $region14: #{tpu_custom_call.1} parent=1 // pred_check
      _
    $region15: #{tpu_custom_call.1} parent=1 // pred_check_branch
      %23 = sbr.rel (0) target = $region17
    $region16: #{tpu_custom_call.1} parent=1 // pred_region
      _
    $region17: #{tpu_custom_call.1} parent=1 // pred_fallthru
      _
    // Predicated region
    $region18: #{tpu_custom_call.1} parent=1 // pred_check
      _
    $region19: #{tpu_custom_call.1} parent=1 // pred_check_branch
      %25 = sbr.rel (0) target = $region21
    $region20: #{tpu_custom_call.1} parent=1 // pred_region
      _
    $region21: #{tpu_custom_call.1} parent=1 // pred_fallthru
      _
    // Predicated region
    $region22: #{tpu_custom_call.1} parent=1 // pred_check
      _
    $region23: #{tpu_custom_call.1} parent=1 // pred_check_branch
      %27 = sbr.rel (0) target = $region25
    $region24: #{tpu_custom_call.1} parent=1 // pred_region
      _
    $region25: #{tpu_custom_call.1} parent=1 // pred_fallthru
      _
    // Predicated region
    $region26: #{tpu_custom_call.1} parent=1 // pred_check
      _
    $region27: #{tpu_custom_call.1} parent=1 // pred_check_branch
      %29 = sbr.rel (0) target = $region29
    $region28: #{tpu_custom_call.1} parent=1 // pred_region
      _
    $region29: #{tpu_custom_call.1} parent=1 // pred_fallthru
      _
    // Predicated region
    $region30: #{tpu_custom_call.1} parent=1 // pred_check
      _
    $region31: #{tpu_custom_call.1} parent=1 // pred_check_branch
      %31 = sbr.rel (0) target = $region33
    $region32: #{tpu_custom_call.1} parent=1 // pred_region
      _
    $region33: #{tpu_custom_call.1} parent=1 // pred_fallthru
      _
    %v33 = vld [vmem:[%s0] sm:$0xff]
    %v34 = vpack.c.bf16 %v33, %v33
    %v35 = vld [vmem:[%s1] sm:$0xff]
    %v36 = vpack.c.bf16 %v35, %v35
    %38 = vrot.lane.b32.xlu0 %v36, 16
    %v39 = vpop.permute.xlu0 %38
    %vm40 = vcmask 130048
    %v43 = vsel %vm40, %v34, %v39
    %v44 = vld [vmem:[%s2] sm:$0xf]
    %v45 = vld [vmem:[%s2 + $0x4] sm:$0xf]
    %v46 = vld [vmem:[%s2 + $0x8] sm:$0xf]
    %v47 = vld [vmem:[%s2 + $0xc] sm:$0xf]
    %v48 = vld [vmem:[%s2 + $0x10] sm:$0xf]
    %v49 = vld [vmem:[%s2 + $0x14] sm:$0xf]
    %v50 = vld [vmem:[%s2 + $0x18] sm:$0xf]
    %v51 = vld [vmem:[%s2 + $0x1c] sm:$0xf]
    %v52 = vld [vmem:[%s3] sm:$0xff]
    %v53 = vld [vmem:[%s3 + $0x8] sm:$0xff]
    %v54 = vld [vmem:[%s3 + $0x10] sm:$0xff]
    %v55 = vld [vmem:[%s3 + $0x18] sm:$0xff]
    %v56 = vld [vmem:[%s3 + $0x20] sm:$0xff]
    %v57 = vld [vmem:[%s3 + $0x28] sm:$0xff]
    %v58 = vld [vmem:[%s3 + $0x30] sm:$0xff]
    %v59 = vld [vmem:[%s3 + $0x38] sm:$0xff]
    %61 = vset.pattern.permute.xlu0 0
    %62 = vperm.xlu0 %61, %v52
    %v63 = vpop.permute.xlu0 %62
    %66 = vset.pattern.permute.xlu0 0
    %67 = vperm.xlu0 %66, %v53
    %v68 = vpop.permute.xlu0 %67
    %71 = vset.pattern.permute.xlu0 0
    %72 = vperm.xlu0 %71, %v54
    %v73 = vpop.permute.xlu0 %72
    %76 = vset.pattern.permute.xlu0 0
    %77 = vperm.xlu0 %76, %v55
    %v78 = vpop.permute.xlu0 %77
    %81 = vset.pattern.permute.xlu0 0
    %82 = vperm.xlu0 %81, %v56
    %v83 = vpop.permute.xlu0 %82
    %86 = vset.pattern.permute.xlu0 0
    %87 = vperm.xlu0 %86, %v57
    %v88 = vpop.permute.xlu0 %87
    %91 = vset.pattern.permute.xlu0 0
    %92 = vperm.xlu0 %91, %v58
    %v93 = vpop.permute.xlu0 %92
    %96 = vset.pattern.permute.xlu0 0
    %97 = vperm.xlu0 %96, %v59
    %v98 = vpop.permute.xlu0 %97
    %v108 = vunpack.c.l.b16 %v44
    %v109 = vunpack.c.l.b16 %v45
    %v110 = vunpack.c.l.b16 %v46
    %v111 = vunpack.c.l.b16 %v47
    %v112 = vunpack.c.l.b16 %v48
    %v113 = vunpack.c.l.b16 %v49
    %v114 = vunpack.c.l.b16 %v50
    %v115 = vunpack.c.l.b16 %v51
    %v116 = vpack.c.b16 %v109, %v108
    %v117 = vpack.c.b16 %v111, %v110
    %v118 = vpack.c.b16 %v113, %v112
    %v119 = vpack.c.b16 %v115, %v114
    %vm120 = vcmask 162816
    %v122 = vsel %vm120, %v116, 0
    %v125 = vsel %vm120, %v117, 0
    %v128 = vsel %vm120, %v118, 0
    %v131 = vsel %vm120, %v119, 0
    %v133 = vsel %vm120, %v43, 0
    %135 = vmatprep.subr.bf16.mxu0 0
    %136 = vmatpush1.bf16.xpose.msra.mxu0 %v133
    %137 = vmatprep.subr.bf16.mxu0 0
    %138 = vmatpush1.bf16.xpose.msra.mxu0 0
    %139 = vmatprep.subr.bf16.mxu0 0
    %140 = vmatpush1.bf16.xpose.msra.mxu0 0
    %141 = vmatprep.subr.bf16.mxu0 0
    %142 = vmatpush1.bf16.xpose.msra.mxu0 0
    %143 = vmatprep.subr.bf16.mxu0 0
    %144 = vmatpush1.bf16.xpose.msra.mxu0 0
    %145 = vmatprep.subr.bf16.mxu0 0
    %146 = vmatpush1.bf16.xpose.msra.mxu0 0
    %147 = vmatprep.subr.bf16.mxu0 0
    %148 = vmatpush1.bf16.xpose.msra.mxu0 0
    %149 = vmatprep.subr.bf16.mxu0 0
    %150 = vmatpush1.bf16.xpose.msra.mxu0 0
    %151 = vmatprep.subr.bf16.mxu0 0
    %152 = vmatpush1.bf16.xpose.msra.mxu0 0
    %153 = vmatprep.subr.bf16.mxu0 0
    %154 = vmatpush1.bf16.xpose.msra.mxu0 0
    %155 = vmatprep.subr.bf16.mxu0 0
    %156 = vmatpush1.bf16.xpose.msra.mxu0 0
    %157 = vmatprep.subr.bf16.mxu0 0
    %158 = vmatpush1.bf16.xpose.msra.mxu0 0
    %159 = vmatprep.subr.bf16.mxu0 0
    %160 = vmatpush1.bf16.xpose.msra.mxu0 0
    %161 = vmatprep.subr.bf16.mxu0 0
    %162 = vmatpush1.bf16.xpose.msra.mxu0 0
    %163 = vmatprep.subr.bf16.mxu0 0
    %164 = vmatpush1.bf16.xpose.msra.mxu0 0
    %165 = vmatprep.subr.bf16.mxu0 0
    %166 = vmatpush1.bf16.xpose.msra.mxu0 0
    %167 = vmatprep.mubr.bf16.mxu0 0
    %168 = vmatmul.mubr.bf16.gmra.mrb[0].mxu0 %v122
    %v169 = vpop.f32.mrb[0].mxu0
    %v170 = vadd.f32 %v63, %v169
    %v171 = vpop.f32.mrb[0].mxu0
    %v172 = vpop.f32.mrb[0].mxu0
    %v173 = vadd.f32 %v68, %v172
    %v174 = vpop.f32.mrb[0].mxu0
    %175 = vmatprep.mubr.bf16.mxu0 0
    %176 = vmatmul.mubr.bf16.gmra.mrb[0].mxu0 %v125
    %v177 = vpop.f32.mrb[0].mxu0
    %v178 = vadd.f32 %v73, %v177
    %v179 = vpop.f32.mrb[0].mxu0
    %v180 = vpop.f32.mrb[0].mxu0
    %v181 = vadd.f32 %v78, %v180
    %v182 = vpop.f32.mrb[0].mxu0
    %183 = vmatprep.mubr.bf16.mxu0 0
    %184 = vmatmul.mubr.bf16.gmra.mrb[0].mxu0 %v128
    %v185 = vpop.f32.mrb[0].mxu0
    %v186 = vadd.f32 %v83, %v185
    %v187 = vpop.f32.mrb[0].mxu0
    %v188 = vpop.f32.mrb[0].mxu0
    %v189 = vadd.f32 %v88, %v188
    %v190 = vpop.f32.mrb[0].mxu0
    %191 = vmatprep.mubr.bf16.mxu0 0
    %192 = vmatmul.mubr.bf16.gmra.mrb[0].mxu0 %v131
    %v193 = vpop.f32.mrb[0].mxu0
    %v194 = vadd.f32 %v93, %v193
    %v195 = vpop.f32.mrb[0].mxu0
    %v196 = vpop.f32.mrb[0].mxu0
    %v197 = vadd.f32 %v98, %v196
    %v198 = vpop.f32.mrb[0].mxu0
    %199 = vdwg.mxu0
    %v200 = vmax.f32 %v170, 0.0
    %v201 = vmax.f32 %v173, 0.0
    %v202 = vmax.f32 %v178, 0.0
    %v203 = vmax.f32 %v181, 0.0
    %v204 = vmax.f32 %v186, 0.0
    %v205 = vmax.f32 %v189, 0.0
    %v206 = vmax.f32 %v194, 0.0
    %v207 = vmax.f32 %v197, 0.0
    %v208 = vld [vmem:[%s4] sm:$0xf]
    %v209 = vld [vmem:[%s4 + $0x4] sm:$0xf]
    %v210 = vld [vmem:[%s4 + $0x8] sm:$0xf]
    %v211 = vld [vmem:[%s4 + $0xc] sm:$0xf]
    %v212 = vld [vmem:[%s4 + $0x10] sm:$0xf]
    %v213 = vld [vmem:[%s4 + $0x14] sm:$0xf]
    %v214 = vld [vmem:[%s4 + $0x18] sm:$0xf]
    %v215 = vld [vmem:[%s4 + $0x1c] sm:$0xf]
    %v216 = vpack.c.bf16 %v201, %v200
    %v217 = vpack.c.bf16 %v203, %v202
    %v218 = vpack.c.bf16 %v205, %v204
    %v219 = vpack.c.bf16 %v207, %v206
    %v220 = vld [vmem:[%s5] sm:$0xff]
    %v221 = vld [vmem:[%s5 + $0x8] sm:$0xff]
    %v222 = vld [vmem:[%s5 + $0x10] sm:$0xff]
    %v223 = vld [vmem:[%s5 + $0x18] sm:$0xff]
    %v224 = vld [vmem:[%s5 + $0x20] sm:$0xff]
    %v225 = vld [vmem:[%s5 + $0x28] sm:$0xff]
    %v226 = vld [vmem:[%s5 + $0x30] sm:$0xff]
    %v227 = vld [vmem:[%s5 + $0x38] sm:$0xff]
    %229 = vset.pattern.permute.xlu0 0
    %230 = vperm.xlu0 %229, %v220
    %v231 = vpop.permute.xlu0 %230
    %234 = vset.pattern.permute.xlu0 0
    %235 = vperm.xlu0 %234, %v221
    %v236 = vpop.permute.xlu0 %235
    %239 = vset.pattern.permute.xlu0 0
    %240 = vperm.xlu0 %239, %v222
    %v241 = vpop.permute.xlu0 %240
    %244 = vset.pattern.permute.xlu0 0
    %245 = vperm.xlu0 %244, %v223
    %v246 = vpop.permute.xlu0 %245
    %249 = vset.pattern.permute.xlu0 0
    %250 = vperm.xlu0 %249, %v224
    %v251 = vpop.permute.xlu0 %250
    %254 = vset.pattern.permute.xlu0 0
    %255 = vperm.xlu0 %254, %v225
    %v256 = vpop.permute.xlu0 %255
    %259 = vset.pattern.permute.xlu0 0
    %260 = vperm.xlu0 %259, %v226
    %v261 = vpop.permute.xlu0 %260
    %264 = vset.pattern.permute.xlu0 0
    %265 = vperm.xlu0 %264, %v227
    %v266 = vpop.permute.xlu0 %265
    %v276 = vunpack.c.l.b16 %v208
    %v277 = vunpack.c.l.b16 %v209
    %v278 = vunpack.c.l.b16 %v210
    %v279 = vunpack.c.l.b16 %v211
    %v280 = vunpack.c.l.b16 %v212
    %v281 = vunpack.c.l.b16 %v213
    %v282 = vunpack.c.l.b16 %v214
    %v283 = vunpack.c.l.b16 %v215
    %v284 = vpack.c.b16 %v277, %v276
    %v285 = vpack.c.b16 %v279, %v278
    %v286 = vpack.c.b16 %v281, %v280
    %v287 = vpack.c.b16 %v283, %v282
    %vm288 = vcmask 523264
    %v290 = vsel %vm288, %v284, 0
    %v293 = vsel %vm288, %v285, 0
    %v296 = vsel %vm288, %v286, 0
    %v299 = vsel %vm288, %v287, 0
    %301 = vmatprep.subr.bf16.mxu0 0
    %302 = vmatpush1.bf16.msra.mxu0 %v216
    %303 = vmatprep.subr.bf16.mxu0 0
    %304 = vmatpush1.bf16.msra.mxu0 %v217
    %305 = vmatprep.subr.bf16.mxu0 0
    %306 = vmatpush1.bf16.msra.mxu0 %v218
    %307 = vmatprep.subr.bf16.mxu0 0
    %308 = vmatpush1.bf16.msra.mxu0 %v219
    %309 = vmatprep.subr.bf16.mxu0 0
    %310 = vmatpush1.bf16.msra.mxu0 0
    %311 = vmatprep.subr.bf16.mxu0 0
    %312 = vmatpush1.bf16.msra.mxu0 0
    %313 = vmatprep.subr.bf16.mxu0 0
    %314 = vmatpush1.bf16.msra.mxu0 0
    %315 = vmatprep.subr.bf16.mxu0 0
    %316 = vmatpush1.bf16.msra.mxu0 0
    %317 = vmatprep.subr.bf16.mxu0 0
    %318 = vmatpush1.bf16.msra.mxu0 0
    %319 = vmatprep.subr.bf16.mxu0 0
    %320 = vmatpush1.bf16.msra.mxu0 0
    %321 = vmatprep.subr.bf16.mxu0 0
    %322 = vmatpush1.bf16.msra.mxu0 0
    %323 = vmatprep.subr.bf16.mxu0 0
    %324 = vmatpush1.bf16.msra.mxu0 0
    %325 = vmatprep.subr.bf16.mxu0 0
    %326 = vmatpush1.bf16.msra.mxu0 0
    %327 = vmatprep.subr.bf16.mxu0 0
    %328 = vmatpush1.bf16.msra.mxu0 0
    %329 = vmatprep.subr.bf16.mxu0 0
    %330 = vmatpush1.bf16.msra.mxu0 0
    %331 = vmatprep.subr.bf16.mxu0 0
    %332 = vmatpush1.bf16.msra.mxu0 0
    %333 = vmatprep.mubr.bf16.mxu0 0
    %334 = vmatmul.mubr.bf16.gmra.mrb[0].mxu0 %v290
    %v335 = vpop.f32.mrb[0].mxu0
    %v336 = vadd.f32 %v231, %v335
    %v337 = vpop.f32.mrb[0].mxu0
    %v338 = vpop.f32.mrb[0].mxu0
    %v339 = vadd.f32 %v236, %v338
    %v340 = vpop.f32.mrb[0].mxu0
    %341 = vmatprep.mubr.bf16.mxu0 0
    %342 = vmatmul.mubr.bf16.gmra.mrb[0].mxu0 %v293
    %v343 = vpop.f32.mrb[0].mxu0
    %v344 = vadd.f32 %v241, %v343
    %v345 = vpop.f32.mrb[0].mxu0
    %v346 = vpop.f32.mrb[0].mxu0
    %v347 = vadd.f32 %v246, %v346
    %v348 = vpop.f32.mrb[0].mxu0
    %349 = vmatprep.mubr.bf16.mxu0 0
    %350 = vmatmul.mubr.bf16.gmra.mrb[0].mxu0 %v296
    %v351 = vpop.f32.mrb[0].mxu0
    %v352 = vadd.f32 %v251, %v351
    %v353 = vpop.f32.mrb[0].mxu0
    %v354 = vpop.f32.mrb[0].mxu0
    %v355 = vadd.f32 %v256, %v354
    %v356 = vpop.f32.mrb[0].mxu0
    %357 = vmatprep.mubr.bf16.mxu0 0
    %358 = vmatmul.mubr.bf16.gmra.mrb[0].mxu0 %v299
    %v359 = vpop.f32.mrb[0].mxu0
    %v360 = vadd.f32 %v261, %v359
    %v361 = vpop.f32.mrb[0].mxu0
    %v362 = vpop.f32.mrb[0].mxu0
    %v363 = vadd.f32 %v266, %v362
    %v364 = vpop.f32.mrb[0].mxu0
    %365 = vdwg.mxu0
    %v366 = vmax.f32 %v336, 0.0
    %v367 = vmax.f32 %v339, 0.0
    %v368 = vmax.f32 %v344, 0.0
    %v369 = vmax.f32 %v347, 0.0
    %v370 = vmax.f32 %v352, 0.0
    %v371 = vmax.f32 %v355, 0.0
    %v372 = vmax.f32 %v360, 0.0
    %v373 = vmax.f32 %v363, 0.0
    %v374 = vld [vmem:[%s6] sm:$0xff]
    %v375 = vld [vmem:[%s6 + $0x8] sm:$0xff]
    %v376 = vld [vmem:[%s6 + $0x10] sm:$0xff]
    %v377 = vld [vmem:[%s6 + $0x18] sm:$0xff]
    %v378 = vld [vmem:[%s6 + $0x20] sm:$0xff]
    %v379 = vld [vmem:[%s6 + $0x28] sm:$0xff]
    %v380 = vld [vmem:[%s6 + $0x30] sm:$0xff]
    %v381 = vld [vmem:[%s6 + $0x38] sm:$0xff]
    %383 = vset.pattern.permute.xlu0 0
    %384 = vperm.xlu0 %383, %v374
    %v385 = vpop.permute.xlu0 %384
    %388 = vset.pattern.permute.xlu0 0
    %389 = vperm.xlu0 %388, %v375
    %v390 = vpop.permute.xlu0 %389
    %393 = vset.pattern.permute.xlu0 0
    %394 = vperm.xlu0 %393, %v376
    %v395 = vpop.permute.xlu0 %394
    %398 = vset.pattern.permute.xlu0 0
    %399 = vperm.xlu0 %398, %v377
    %v400 = vpop.permute.xlu0 %399
    %403 = vset.pattern.permute.xlu0 0
    %404 = vperm.xlu0 %403, %v378
    %v405 = vpop.permute.xlu0 %404
    %408 = vset.pattern.permute.xlu0 0
    %409 = vperm.xlu0 %408, %v379
    %v410 = vpop.permute.xlu0 %409
    %413 = vset.pattern.permute.xlu0 0
    %414 = vperm.xlu0 %413, %v380
    %v415 = vpop.permute.xlu0 %414
    %418 = vset.pattern.permute.xlu0 0
    %419 = vperm.xlu0 %418, %v381
    %v420 = vpop.permute.xlu0 %419
    %v422 = vmul.f32 %v366, %v385
    %v423 = vmul.f32 %v367, %v390
    %v424 = vmul.f32 %v368, %v395
    %v425 = vmul.f32 %v369, %v400
    %v426 = vmul.f32 %v370, %v405
    %v427 = vmul.f32 %v371, %v410
    %v428 = vmul.f32 %v372, %v415
    %v429 = vmul.f32 %v373, %v420
    %vm430 = vcmask 64512
    %v431 = vsel %vm430, %v422, 0.0
    %v432 = vsel %vm430, %v423, 0.0
    %v433 = vadd.f32 %v431, %v432
    %v434 = vsel %vm430, %v424, 0.0
    %v435 = vadd.f32 %v433, %v434
    %v436 = vsel %vm430, %v425, 0.0
    %v437 = vadd.f32 %v435, %v436
    %v438 = vsel %vm430, %v426, 0.0
    %v439 = vadd.f32 %v437, %v438
    %v440 = vsel %vm430, %v427, 0.0
    %v441 = vadd.f32 %v439, %v440
    %v442 = vsel %vm430, %v428, 0.0
    %v443 = vadd.f32 %v441, %v442
    %v444 = vsel %vm430, %v429, 0.0
    %v445 = vadd.f32 %v443, %v444
    %v446 = vrot.slane %v445, 4
    %v447 = vadd.f32 %v445, %v446
    %v448 = vrot.slane %v447, 2
    %v449 = vadd.f32 %v447, %v448
    %v450 = vrot.slane %v449, 1
    %v451 = vadd.f32 %v449, %v450
    %v452 = vld [vmem:[#allocation2] sm:$0x1]
    %454 = vset.pattern.permute.xlu0 0
    %455 = vperm.xlu0 %454, %v452
    %v456 = vpop.permute.xlu0 %455
    %v458 = vlaneseq
    %v459 = vshrl.u32 %v458, 7
    %v460 = vsub.s32 0, %v459
    %v461 = vrot.slane %v456, %v460
    %v462 = vadd.f32 %v451, %v461
    %vm463 = vcmask 57344
    %464 = vst.msk [vmem:[#allocation3] sm:$0x1] %vm463, %v462
    // Predicated region
    $region34: #{tpu_custom_call.1} parent=1 // pred_check
      _
    $region35: #{tpu_custom_call.1} parent=1 // pred_check_branch
      %466 = sbr.rel (0) target = $region37
    $region36: #{tpu_custom_call.1} parent=1 // pred_region
      %s468 = ssub.s32 16, 16
      %469 = vsyncadd [#allocation4], %s468
      %s471 = sshll.u32 [#allocation3], 4
      %s472 = int_to_ptr.vmem [resolvable:$true] %s471
      %474 = dma.vmem_to_hbm [thread:$0]  %s472, 16, %s8, [#allocation4]
    $region37: #{tpu_custom_call.1} parent=1 // pred_fallthru
      _
    // Predicated region
    $region38: #{tpu_custom_call.1} parent=1 // pred_check
      _
    $region39: #{tpu_custom_call.1} parent=1 // pred_check_branch
      %476 = sbr.rel (0) target = $region41
    $region40: #{tpu_custom_call.1} parent=1 // pred_region
      %477 = dma.done [#allocation4], 16
    $region41: #{tpu_custom_call.1} parent=1 // pred_fallthru
      _
    %478 = vsyncpa [#allocation4], 1

</llo_original>
